<compile_context>
chip_gen: v7x
topology: tpu7x:2x2x1
jax: 0.10.0
libtpu: 0.0.40
codegen_flags: <defaults>
</compile_context>

<pallas_src>
import functools

import jax
import jax.numpy as jnp
from jax.experimental import pallas as pl
from jax.experimental.pallas import tpu as pltpu

BN_EPS = 1e-5
LANE = 128


def _round_up(n, m=LANE):
    return ((n + m - 1) // m) * m


# ---------------------------------------------------------------------------
# Fused kernel: [Linear -> BN -> ReLU] * n_hidden -> Linear(+bias)
# ---------------------------------------------------------------------------
def _fused_mlp_kernel(*refs, n_hidden):
    # refs = (x_ref, [w, gamma, beta] * n_hidden, w_final, b_final, o_ref)
    x_ref = refs[0]
    o_ref = refs[-1]
    p = refs[1:-1]

    x = x_ref[...]                      # (B, n_in_pad)  float32
    inv_b = 1.0 / x.shape[0]

    idx = 0
    for _ in range(n_hidden):
        w = p[idx][...]                 # (n_in_pad, n_out_pad)  -- already transposed
        gamma = p[idx + 1][...]         # (1, n_out_pad)
        beta = p[idx + 2][...]          # (1, n_out_pad)
        idx += 3

        y = jnp.dot(x, w, preferred_element_type=jnp.float32)        # MXU
        # BatchNorm1d training-mode batch stats, biased variance, one reduction pass.
        mean = jnp.sum(y, axis=0, keepdims=True) * inv_b
        mean_sq = jnp.sum(y * y, axis=0, keepdims=True) * inv_b
        var = mean_sq - mean * mean
        scale = gamma * jax.lax.rsqrt(var + BN_EPS)                   # per-column
        shift = beta - mean * scale
        x = jnp.maximum(y * scale + shift, 0.0)                       # BN + ReLU fused

    # Final layer: Linear with bias, identity activation.
    w = p[idx][...]                     # (n_in_pad, n_out_pad)
    b = p[idx + 1][...]                 # (1, n_out_pad)
    y = jnp.dot(x, w, preferred_element_type=jnp.float32)
    o_ref[...] = (y + b).astype(o_ref.dtype)


# ---------------------------------------------------------------------------
# Wrapper: pad to lane-dense shapes, pre-transpose weights, single pallas_call
# ---------------------------------------------------------------------------
def mlp_forward(params, x):
    batch, n_in = x.shape
    n_in_p = _round_up(n_in)

    x_p = jnp.zeros((batch, n_in_p), jnp.float32).at[:, :n_in].set(x)

    kernel_inputs = [x_p]
    flops = 2 * 0
    bytes_accessed = x_p.size * 4
    prev_p = n_in_p

    for (w, gamma, beta) in params["hidden"]:
        n_out, n_in_l = w.shape
        n_out_p = _round_up(n_out)
        # Pre-transpose to (n_in_pad, n_out_pad); zero-pad (padded columns stay 0).
        w_t = jnp.zeros((prev_p, n_out_p), jnp.float32).at[:n_in_l, :n_out].set(w.T)
        g_p = jnp.ones((1, n_out_p), jnp.float32).at[:, :n_out].set(gamma)
        b_p = jnp.zeros((1, n_out_p), jnp.float32).at[:, :n_out].set(beta)
        kernel_inputs += [w_t, g_p, b_p]
        flops += 2 * batch * prev_p * n_out_p
        bytes_accessed += (w_t.size + g_p.size + b_p.size) * 4 + batch * n_out_p * 4
        prev_p = n_out_p

    wf, bf = params["final"]
    n_out, n_in_l = wf.shape
    n_out_p = _round_up(n_out)
    wf_t = jnp.zeros((prev_p, n_out_p), jnp.float32).at[:n_in_l, :n_out].set(wf.T)
    bf_p = jnp.zeros((1, n_out_p), jnp.float32).at[:, :n_out].set(bf)
    kernel_inputs += [wf_t, bf_p]
    flops += 2 * batch * prev_p * n_out_p
    bytes_accessed += (wf_t.size + bf_p.size) * 4 + batch * n_out_p * 4

    n_hidden = len(params["hidden"])
    kernel = functools.partial(_fused_mlp_kernel, n_hidden=n_hidden)

    vmem_spec = pl.BlockSpec(memory_space=pltpu.MemorySpace.VMEM)
    out_p = pl.pallas_call(
        kernel,
        out_shape=jax.ShapeDtypeStruct((batch, n_out_p), jnp.float32),
        in_specs=[vmem_spec] * len(kernel_inputs),
        out_specs=vmem_spec,
        cost_estimate=pl.CostEstimate(
            flops=flops, transcendentals=0, bytes_accessed=bytes_accessed),
    )(*kernel_inputs)

    # Slice off padded output columns.
    return out_p[:, :n_out]


# ---------------------------------------------------------------------------
# Parameter construction (PyTorch-shaped: Linear weight is (out, in))
# ---------------------------------------------------------------------------
def init_mlp_params(key, n_inputs, n_outputs, hiddens):
    params = {"hidden": [], "final": None}
    dims = [n_inputs] + list(hiddens)
    for i in range(len(hiddens)):
        key, kw = jax.random.split(key)
        n_in, n_out = dims[i], dims[i + 1]
        bound = 1.0 / float(n_in) ** 0.5
        w = jax.random.uniform(kw, (n_out, n_in), jnp.float32, -bound, bound)
        gamma = jnp.ones((1, n_out), jnp.float32)     # BatchNorm1d default init
        beta = jnp.zeros((1, n_out), jnp.float32)
        params["hidden"].append((w, gamma, beta))
    key, kw, kb = jax.random.split(key, 3)
    n_in = dims[-1]
    bound = 1.0 / float(n_in) ** 0.5
    w = jax.random.uniform(kw, (n_outputs, n_in), jnp.float32, -bound, bound)
    b = jax.random.uniform(kb, (1, n_outputs), jnp.float32, -bound, bound)
    params["final"] = (w, b)
    return params


# Pure-JAX reference (mirrors the PyTorch module in training mode).
def mlp_reference(params, x):
    for (w, gamma, beta) in params["hidden"]:
        y = x @ w.T
        mean = jnp.mean(y, axis=0, keepdims=True)
        var = jnp.mean((y - mean) ** 2, axis=0, keepdims=True)
        y = (y - mean) * jax.lax.rsqrt(var + BN_EPS) * gamma + beta
        x = jnp.maximum(y, 0.0)
    w, b = params["final"]
    return x @ w.T + b


# ---------------------------------------------------------------------------
if __name__ == "__main__":
    # MLP(n_inputs=16, n_outputs=8, hiddens=[32, 32], activation='relu', batch_norm=True)
    batch, n_inputs, n_outputs = 8, 16, 8
    hiddens = [32, 32]

    key = jax.random.PRNGKey(0)
    key_x, key_p = jax.random.split(key)
    x = jax.random.normal(key_x, (batch, n_inputs), jnp.float32)
    params = init_mlp_params(key_p, n_inputs, n_outputs, hiddens)

    out = mlp_forward(params, x)
    jax.block_until_ready(out)

    assert out.shape == (batch, n_outputs)
    assert out.dtype == jnp.float32
    assert bool(jnp.all(jnp.isfinite(out)))

    ref = mlp_reference(params, x)
    assert jnp.allclose(out, ref, rtol=5e-2, atol=5e-2), (
        "fused kernel diverged from reference")

    print("KERNEL_OK")
</pallas_src>

<mosaic_0001>
module attributes {stable_mosaic.version = 11 : i64} {
  func.func @_fused_mlp_kernel(%arg0: memref<8x128xf32, #tpu.memory_space<vmem>>, %arg1: memref<128x128xf32, #tpu.memory_space<vmem>>, %arg2: memref<1x128xf32, #tpu.memory_space<vmem>>, %arg3: memref<1x128xf32, #tpu.memory_space<vmem>>, %arg4: memref<128x128xf32, #tpu.memory_space<vmem>>, %arg5: memref<1x128xf32, #tpu.memory_space<vmem>>, %arg6: memref<1x128xf32, #tpu.memory_space<vmem>>, %arg7: memref<128x128xf32, #tpu.memory_space<vmem>>, %arg8: memref<1x128xf32, #tpu.memory_space<vmem>>, %arg9: memref<8x128xf32, #tpu.memory_space<vmem>>) attributes {dimension_semantics = [], scalar_prefetch = 0 : i64, scratch_operands = 0 : i64, tpu.core_type = #tpu.core_type<tc>} {
    %c0 = arith.constant 0 : index
    %c0_0 = arith.constant 0 : index
    %0 = vector.load %arg0[%c0, %c0_0] : memref<8x128xf32, #tpu.memory_space<vmem>>, vector<8x128xf32>
    %c0_1 = arith.constant 0 : index
    %c0_2 = arith.constant 0 : index
    %1 = vector.load %arg1[%c0_1, %c0_2] : memref<128x128xf32, #tpu.memory_space<vmem>>, vector<128x128xf32>
    %c0_3 = arith.constant 0 : index
    %c0_4 = arith.constant 0 : index
    %2 = vector.load %arg2[%c0_3, %c0_4] : memref<1x128xf32, #tpu.memory_space<vmem>>, vector<1x128xf32>
    %c0_5 = arith.constant 0 : index
    %c0_6 = arith.constant 0 : index
    %3 = vector.load %arg3[%c0_5, %c0_6] : memref<1x128xf32, #tpu.memory_space<vmem>>, vector<1x128xf32>
    %cst = arith.constant dense<0.000000e+00> : vector<8x128xf32>
    %4 = tpu.matmul %0, %1, %cst {dimension_numbers = #tpu.dot_dimension_numbers<[1], [0], [0], [1], [0, 0, 1, 1], [], []>} : vector<8x128xf32>, vector<128x128xf32>, vector<8x128xf32> -> vector<8x128xf32>
    %cst_7 = arith.constant dense<0.000000e+00> : vector<128xf32>
    %5 = vector.multi_reduction <add>, %4, %cst_7 [0] : vector<8x128xf32> to vector<128xf32>
    %6 = vector.shape_cast %5 : vector<128xf32> to vector<1x128xf32>
    %cst_8 = arith.constant 1.250000e-01 : f32
    %7 = vector.broadcast %cst_8 : f32 to vector<1x128xf32>
    %8 = arith.mulf %6, %7 : vector<1x128xf32>
    %9 = arith.mulf %4, %4 : vector<8x128xf32>
    %cst_9 = arith.constant dense<0.000000e+00> : vector<128xf32>
    %10 = vector.multi_reduction <add>, %9, %cst_9 [0] : vector<8x128xf32> to vector<128xf32>
    %11 = vector.shape_cast %10 : vector<128xf32> to vector<1x128xf32>
    %cst_10 = arith.constant 1.250000e-01 : f32
    %12 = vector.broadcast %cst_10 : f32 to vector<1x128xf32>
    %13 = arith.mulf %11, %12 : vector<1x128xf32>
    %14 = arith.mulf %8, %8 : vector<1x128xf32>
    %15 = arith.subf %13, %14 : vector<1x128xf32>
    %cst_11 = arith.constant 9.99999974E-6 : f32
    %16 = vector.broadcast %cst_11 : f32 to vector<1x128xf32>
    %17 = arith.addf %15, %16 : vector<1x128xf32>
    %18 = math.rsqrt %17 : vector<1x128xf32>
    %19 = arith.mulf %2, %18 : vector<1x128xf32>
    %20 = arith.mulf %8, %19 : vector<1x128xf32>
    %21 = arith.subf %3, %20 : vector<1x128xf32>
    %22 = vector.broadcast %19 : vector<1x128xf32> to vector<8x128xf32>
    %23 = arith.mulf %4, %22 : vector<8x128xf32>
    %24 = vector.broadcast %21 : vector<1x128xf32> to vector<8x128xf32>
    %25 = arith.addf %23, %24 : vector<8x128xf32>
    %cst_12 = arith.constant 0.000000e+00 : f32
    %26 = vector.broadcast %cst_12 : f32 to vector<8x128xf32>
    %27 = arith.maximumf %25, %26 : vector<8x128xf32>
    %c0_13 = arith.constant 0 : index
    %c0_14 = arith.constant 0 : index
    %28 = vector.load %arg4[%c0_13, %c0_14] : memref<128x128xf32, #tpu.memory_space<vmem>>, vector<128x128xf32>
    %c0_15 = arith.constant 0 : index
    %c0_16 = arith.constant 0 : index
    %29 = vector.load %arg5[%c0_15, %c0_16] : memref<1x128xf32, #tpu.memory_space<vmem>>, vector<1x128xf32>
    %c0_17 = arith.constant 0 : index
    %c0_18 = arith.constant 0 : index
    %30 = vector.load %arg6[%c0_17, %c0_18] : memref<1x128xf32, #tpu.memory_space<vmem>>, vector<1x128xf32>
    %cst_19 = arith.constant dense<0.000000e+00> : vector<8x128xf32>
    %31 = tpu.matmul %27, %28, %cst_19 {dimension_numbers = #tpu.dot_dimension_numbers<[1], [0], [0], [1], [0, 0, 1, 1], [], []>} : vector<8x128xf32>, vector<128x128xf32>, vector<8x128xf32> -> vector<8x128xf32>
    %cst_20 = arith.constant dense<0.000000e+00> : vector<128xf32>
    %32 = vector.multi_reduction <add>, %31, %cst_20 [0] : vector<8x128xf32> to vector<128xf32>
    %33 = vector.shape_cast %32 : vector<128xf32> to vector<1x128xf32>
    %cst_21 = arith.constant 1.250000e-01 : f32
    %34 = vector.broadcast %cst_21 : f32 to vector<1x128xf32>
    %35 = arith.mulf %33, %34 : vector<1x128xf32>
    %36 = arith.mulf %31, %31 : vector<8x128xf32>
    %cst_22 = arith.constant dense<0.000000e+00> : vector<128xf32>
    %37 = vector.multi_reduction <add>, %36, %cst_22 [0] : vector<8x128xf32> to vector<128xf32>
    %38 = vector.shape_cast %37 : vector<128xf32> to vector<1x128xf32>
    %cst_23 = arith.constant 1.250000e-01 : f32
    %39 = vector.broadcast %cst_23 : f32 to vector<1x128xf32>
    %40 = arith.mulf %38, %39 : vector<1x128xf32>
    %41 = arith.mulf %35, %35 : vector<1x128xf32>
    %42 = arith.subf %40, %41 : vector<1x128xf32>
    %cst_24 = arith.constant 9.99999974E-6 : f32
    %43 = vector.broadcast %cst_24 : f32 to vector<1x128xf32>
    %44 = arith.addf %42, %43 : vector<1x128xf32>
    %45 = math.rsqrt %44 : vector<1x128xf32>
    %46 = arith.mulf %29, %45 : vector<1x128xf32>
    %47 = arith.mulf %35, %46 : vector<1x128xf32>
    %48 = arith.subf %30, %47 : vector<1x128xf32>
    %49 = vector.broadcast %46 : vector<1x128xf32> to vector<8x128xf32>
    %50 = arith.mulf %31, %49 : vector<8x128xf32>
    %51 = vector.broadcast %48 : vector<1x128xf32> to vector<8x128xf32>
    %52 = arith.addf %50, %51 : vector<8x128xf32>
    %cst_25 = arith.constant 0.000000e+00 : f32
    %53 = vector.broadcast %cst_25 : f32 to vector<8x128xf32>
    %54 = arith.maximumf %52, %53 : vector<8x128xf32>
    %c0_26 = arith.constant 0 : index
    %c0_27 = arith.constant 0 : index
    %55 = vector.load %arg7[%c0_26, %c0_27] : memref<128x128xf32, #tpu.memory_space<vmem>>, vector<128x128xf32>
    %c0_28 = arith.constant 0 : index
    %c0_29 = arith.constant 0 : index
    %56 = vector.load %arg8[%c0_28, %c0_29] : memref<1x128xf32, #tpu.memory_space<vmem>>, vector<1x128xf32>
    %cst_30 = arith.constant dense<0.000000e+00> : vector<8x128xf32>
    %57 = tpu.matmul %54, %55, %cst_30 {dimension_numbers = #tpu.dot_dimension_numbers<[1], [0], [0], [1], [0, 0, 1, 1], [], []>} : vector<8x128xf32>, vector<128x128xf32>, vector<8x128xf32> -> vector<8x128xf32>
    %58 = vector.broadcast %56 : vector<1x128xf32> to vector<8x128xf32>
    %59 = arith.addf %57, %58 : vector<8x128xf32>
    %c0_31 = arith.constant 0 : index
    %c0_32 = arith.constant 0 : index
    %60 = vector.load %arg9[%c0_31, %c0_32] : memref<8x128xf32, #tpu.memory_space<vmem>>, vector<8x128xf32>
    tpu.vector_store %arg9[%c0_31, %c0_32], %59 {strides = array<i32>} : memref<8x128xf32, #tpu.memory_space<vmem>>, vector<8x128xf32>,
    return
  }
}

</mosaic_0001>

<llo_original>
// kernel: tpu_custom_call.1
$region0: #{tpu_custom_call.1}
  #allocation0 [shape = 'u32[]', space=smem, size = 0x4, offset = 0x4, fixed_abs, tag = 'smem constant byte address 0x4 - core index']
  #allocation1 [shape = 'u32[144,128]{1,0:T(1,128)}', space=vmem, size = 0x12000, scoped, tag = 'internal scratch']
  %s0 = inlined_call_operand.hbm [shape: f32[8,128], index: 0, kind: input, shape index: {}]
  %s1 = inlined_call_operand.hbm [shape: f32[128,128], index: 1, kind: input, shape index: {}]
  %s2 = inlined_call_operand.vmem [shape: f32[1,128], index: 2, kind: input, shape index: {}]
  %s3 = inlined_call_operand.vmem [shape: f32[1,128], index: 3, kind: input, shape index: {}]
  %s4 = inlined_call_operand.hbm [shape: f32[128,128], index: 4, kind: input, shape index: {}]
  %s5 = inlined_call_operand.vmem [shape: f32[1,128], index: 5, kind: input, shape index: {}]
  %s6 = inlined_call_operand.vmem [shape: f32[1,128], index: 6, kind: input, shape index: {}]
  %s7 = inlined_call_operand.hbm [shape: f32[128,128], index: 7, kind: input, shape index: {}]
  %s8 = inlined_call_operand.vmem [shape: f32[1,128], index: 8, kind: input, shape index: {}]
  %s9 = inlined_call_operand.hbm [shape: f32[8,128], index: 9, kind: output, shape index: {}]
  %s10 = sld [smem:[#allocation0]]
  $region62: #{tpu_custom_call.1} parent=0
    _
  %s12 = ssub.s32 1, %s10
  %s13 = scalar_select 0, %s12, %s10
  $region1: #{tpu_custom_call.1} parent=0
    #allocation2 [shape = 'u8[4096]{0}', space=vmem, size = 0x1000, scoped, tag = 'input window, operand 0, single buffered']
    #allocation3 [shape = 's32[1]{0}', space=sflag, size = 0x4, scoped, tag = 'scoped memory for tpu_custom_call.1']
    #allocation4 [shape = 's32[1]{0}', space=sflag, size = 0x4, scoped, tag = 'scoped memory for tpu_custom_call.1']
    #allocation5 [shape = 'u8[65536]{0}', space=vmem, size = 0x10000, scoped, tag = 'input window, operand 1, single buffered']
    #allocation6 [shape = 's32[1]{0}', space=sflag, size = 0x4, scoped, tag = 'scoped memory for tpu_custom_call.1']
    #allocation7 [shape = 'u8[65536]{0}', space=vmem, size = 0x10000, scoped, tag = 'input window, operand 4, single buffered']
    #allocation8 [shape = 'u8[65536]{0}', space=vmem, size = 0x10000, scoped, tag = 'input window, operand 7, single buffered']
    #allocation9 [shape = 's32[1]{0}', space=sflag, size = 0x4, scoped, tag = 'scoped memory for tpu_custom_call.1']
    #allocation10 [shape = 'u8[4096]{0}', space=vmem, size = 0x1000, scoped, tag = 'output window, operand 0, single buffered']
    %14 = vsyncpa [#allocation3], 0
    %15 = vsyncpa [#allocation6], 0
    %16 = vsyncpa [#allocation9], 0
    %17 = vsyncpa [#allocation4], 0
    // Predicated region
    $region2: #{tpu_custom_call.1} parent=1 // pred_check
      _
    $region3: #{tpu_custom_call.1} parent=1 // pred_check_branch
      %19 = sbr.rel (0) target = $region5
    $region4: #{tpu_custom_call.1} parent=1 // pred_region
      %s21 = ssub.s32 128, 128
      %22 = vsyncadd [#allocation3], %s21
      %s24 = sshll.u32 [#allocation2], 4
      %s25 = int_to_ptr.vmem [resolvable:$true] %s24
      %27 = dma.hbm_to_vmem [thread:$0]  %s0, 128, %s25, [#allocation3]
    $region5: #{tpu_custom_call.1} parent=1 // pred_fallthru
      _
    // Predicated region
    $region6: #{tpu_custom_call.1} parent=1 // pred_check
      _
    $region7: #{tpu_custom_call.1} parent=1 // pred_check_branch
      %29 = sbr.rel (0) target = $region9
    $region8: #{tpu_custom_call.1} parent=1 // pred_region
      %s31 = ssub.s32 2048, 2048
      %32 = vsyncadd [#allocation6], %s31
      %s33 = sshll.u32 [#allocation5], 4
      %s34 = int_to_ptr.vmem [resolvable:$true] %s33
      %39 = dma.hbm_to_vmem [thread:$0]  %s1, 2048, %s34, [#allocation6], 128, 128, 8
    $region9: #{tpu_custom_call.1} parent=1 // pred_fallthru
      _
    // Predicated region
    $region10: #{tpu_custom_call.1} parent=1 // pred_check
      _
    $region11: #{tpu_custom_call.1} parent=1 // pred_check_branch
      %41 = sbr.rel (0) target = $region13
    $region12: #{tpu_custom_call.1} parent=1 // pred_region
      _
    $region13: #{tpu_custom_call.1} parent=1 // pred_fallthru
      _
    // Predicated region
    $region14: #{tpu_custom_call.1} parent=1 // pred_check
      _
    $region15: #{tpu_custom_call.1} parent=1 // pred_check_branch
      %43 = sbr.rel (0) target = $region17
    $region16: #{tpu_custom_call.1} parent=1 // pred_region
      _
    $region17: #{tpu_custom_call.1} parent=1 // pred_fallthru
      _
    // Predicated region
    $region18: #{tpu_custom_call.1} parent=1 // pred_check
      _
    $region19: #{tpu_custom_call.1} parent=1 // pred_check_branch
      %45 = sbr.rel (0) target = $region21
    $region20: #{tpu_custom_call.1} parent=1 // pred_region
      %s47 = ssub.s32 2048, 2048
      %48 = vsyncadd [#allocation6], %s47
      %s49 = sshll.u32 [#allocation7], 4
      %s50 = int_to_ptr.vmem [resolvable:$true] %s49
      %55 = dma.hbm_to_vmem [thread:$0]  %s4, 2048, %s50, [#allocation6], 128, 128, 8
    $region21: #{tpu_custom_call.1} parent=1 // pred_fallthru
      _
    // Predicated region
    $region22: #{tpu_custom_call.1} parent=1 // pred_check
      _
    $region23: #{tpu_custom_call.1} parent=1 // pred_check_branch
      %57 = sbr.rel (0) target = $region25
    $region24: #{tpu_custom_call.1} parent=1 // pred_region
      _
    $region25: #{tpu_custom_call.1} parent=1 // pred_fallthru
      _
    // Predicated region
    $region26: #{tpu_custom_call.1} parent=1 // pred_check
      _
    $region27: #{tpu_custom_call.1} parent=1 // pred_check_branch
      %59 = sbr.rel (0) target = $region29
    $region28: #{tpu_custom_call.1} parent=1 // pred_region
      _
    $region29: #{tpu_custom_call.1} parent=1 // pred_fallthru
      _
    // Predicated region
    $region30: #{tpu_custom_call.1} parent=1 // pred_check
      _
    $region31: #{tpu_custom_call.1} parent=1 // pred_check_branch
      %61 = sbr.rel (0) target = $region33
    $region32: #{tpu_custom_call.1} parent=1 // pred_region
      %s63 = ssub.s32 2048, 2048
      %64 = vsyncadd [#allocation9], %s63
      %s65 = sshll.u32 [#allocation8], 4
      %s66 = int_to_ptr.vmem [resolvable:$true] %s65
      %71 = dma.hbm_to_vmem [thread:$0]  %s7, 2048, %s66, [#allocation9], 128, 128, 8
    $region33: #{tpu_custom_call.1} parent=1 // pred_fallthru
      _
    // Predicated region
    $region34: #{tpu_custom_call.1} parent=1 // pred_check
      _
    $region35: #{tpu_custom_call.1} parent=1 // pred_check_branch
      %73 = sbr.rel (0) target = $region37
    $region36: #{tpu_custom_call.1} parent=1 // pred_region
      _
    $region37: #{tpu_custom_call.1} parent=1 // pred_fallthru
      _
    // Predicated region
    $region38: #{tpu_custom_call.1} parent=1 // pred_check
      _
    $region39: #{tpu_custom_call.1} parent=1 // pred_check_branch
      %75 = sbr.rel (0) target = $region41
    $region40: #{tpu_custom_call.1} parent=1 // pred_region
      %76 = dma.done [#allocation3], 128
    $region41: #{tpu_custom_call.1} parent=1 // pred_fallthru
      _
    // Predicated region
    $region42: #{tpu_custom_call.1} parent=1 // pred_check
      _
    $region43: #{tpu_custom_call.1} parent=1 // pred_check_branch
      %78 = sbr.rel (0) target = $region45
    $region44: #{tpu_custom_call.1} parent=1 // pred_region
      %79 = dma.done [#allocation6], 2048
    $region45: #{tpu_custom_call.1} parent=1 // pred_fallthru
      _
    // Predicated region
    $region46: #{tpu_custom_call.1} parent=1 // pred_check
      _
    $region47: #{tpu_custom_call.1} parent=1 // pred_check_branch
      %81 = sbr.rel (0) target = $region49
    $region48: #{tpu_custom_call.1} parent=1 // pred_region
      %82 = dma.done [#allocation6], 2048
    $region49: #{tpu_custom_call.1} parent=1 // pred_fallthru
      _
    // Predicated region
    $region50: #{tpu_custom_call.1} parent=1 // pred_check
      _
    $region51: #{tpu_custom_call.1} parent=1 // pred_check_branch
      %84 = sbr.rel (0) target = $region53
    $region52: #{tpu_custom_call.1} parent=1 // pred_region
      %85 = dma.done [#allocation9], 2048
    $region53: #{tpu_custom_call.1} parent=1 // pred_fallthru
      _
    %v86 = vld [vmem:[#allocation2] sm:$0xff]
    %v87 = vld [vmem:[#allocation5] sm:$0xff]
    %v88 = vld [vmem:[#allocation5 + $0x8] sm:$0xff]
    %v89 = vld [vmem:[#allocation5 + $0x10] sm:$0xff]
    %v90 = vld [vmem:[#allocation5 + $0x18] sm:$0xff]
    %v91 = vld [vmem:[#allocation5 + $0x20] sm:$0xff]
    %v92 = vld [vmem:[#allocation5 + $0x28] sm:$0xff]
    %v93 = vld [vmem:[#allocation5 + $0x30] sm:$0xff]
    %v94 = vld [vmem:[#allocation5 + $0x38] sm:$0xff]
    %v95 = vld [vmem:[#allocation5 + $0x40] sm:$0xff]
    %v96 = vld [vmem:[#allocation5 + $0x48] sm:$0xff]
    %v97 = vld [vmem:[#allocation5 + $0x50] sm:$0xff]
    %v98 = vld [vmem:[#allocation5 + $0x58] sm:$0xff]
    %v99 = vld [vmem:[#allocation5 + $0x60] sm:$0xff]
    %v100 = vld [vmem:[#allocation5 + $0x68] sm:$0xff]
    %v101 = vld [vmem:[#allocation5 + $0x70] sm:$0xff]
    %v102 = vld [vmem:[#allocation5 + $0x78] sm:$0xff]
    %v103 = vld [vmem:[%s2] sm:$0x1]
    %v104 = vld [vmem:[%s3] sm:$0x1]
    %105 = vmatprep.subr.mxu0 0.0
    %106 = vmatpush1.msra.mxu0 %v87
    %107 = vmatprep.subr.mxu0 0.0
    %108 = vmatpush1.msra.mxu0 %v88
    %109 = vmatprep.subr.mxu0 0.0
    %110 = vmatpush1.msra.mxu0 %v89
    %111 = vmatprep.subr.mxu0 0.0
    %112 = vmatpush1.msra.mxu0 %v90
    %113 = vmatprep.subr.mxu0 0.0
    %114 = vmatpush1.msra.mxu0 %v91
    %115 = vmatprep.subr.mxu0 0.0
    %116 = vmatpush1.msra.mxu0 %v92
    %117 = vmatprep.subr.mxu0 0.0
    %118 = vmatpush1.msra.mxu0 %v93
    %119 = vmatprep.subr.mxu0 0.0
    %120 = vmatpush1.msra.mxu0 %v94
    %121 = vmatprep.subr.mxu0 0.0
    %122 = vmatpush1.msra.mxu0 %v95
    %123 = vmatprep.subr.mxu0 0.0
    %124 = vmatpush1.msra.mxu0 %v96
    %125 = vmatprep.subr.mxu0 0.0
    %126 = vmatpush1.msra.mxu0 %v97
    %127 = vmatprep.subr.mxu0 0.0
    %128 = vmatpush1.msra.mxu0 %v98
    %129 = vmatprep.subr.mxu0 0.0
    %130 = vmatpush1.msra.mxu0 %v99
    %131 = vmatprep.subr.mxu0 0.0
    %132 = vmatpush1.msra.mxu0 %v100
    %133 = vmatprep.subr.mxu0 0.0
    %134 = vmatpush1.msra.mxu0 %v101
    %135 = vmatprep.subr.mxu0 0.0
    %136 = vmatpush1.msra.mxu0 %v102
    %137 = vmatprep.subr.mxu0 0.0
    %138 = vmatpush1.msra.mxu0 0.0
    %139 = vmatprep.subr.mxu0 0.0
    %140 = vmatpush1.msra.mxu0 0.0
    %141 = vmatprep.subr.mxu0 0.0
    %142 = vmatpush1.msra.mxu0 0.0
    %143 = vmatprep.subr.mxu0 0.0
    %144 = vmatpush1.msra.mxu0 0.0
    %145 = vmatprep.subr.mxu0 0.0
    %146 = vmatpush1.msra.mxu0 0.0
    %147 = vmatprep.subr.mxu0 0.0
    %148 = vmatpush1.msra.mxu0 0.0
    %149 = vmatprep.subr.mxu0 0.0
    %150 = vmatpush1.msra.mxu0 0.0
    %151 = vmatprep.subr.mxu0 0.0
    %152 = vmatpush1.msra.mxu0 0.0
    %153 = vmatprep.subr.mxu0 0.0
    %154 = vmatpush1.msra.mxu0 0.0
    %155 = vmatprep.subr.mxu0 0.0
    %156 = vmatpush1.msra.mxu0 0.0
    %157 = vmatprep.subr.mxu0 0.0
    %158 = vmatpush1.msra.mxu0 0.0
    %159 = vmatprep.subr.mxu0 0.0
    %160 = vmatpush1.msra.mxu0 0.0
    %161 = vmatprep.subr.mxu0 0.0
    %162 = vmatpush1.msra.mxu0 0.0
    %163 = vmatprep.subr.mxu0 0.0
    %164 = vmatpush1.msra.mxu0 0.0
    %165 = vmatprep.subr.mxu0 0.0
    %166 = vmatpush1.msra.mxu0 0.0
    %167 = vmatprep.subr.mxu0 0.0
    %168 = vmatpush1.msra.mxu0 0.0
    %169 = vmatprep.mubr.f32.mxu0 0.0
    %170 = vmatmul.mubr.f32.gmra.mrb[0].mxu0 %v86
    %v171 = vpop.f32.mrb[0].mxu0
    %v172 = vadd.f32 0.0, %v171
    %v173 = vpop.f32.mrb[0].mxu0
    %174 = vdwg.mxu0
    %v175 = vrot.slane %v172, 4
    %v176 = vadd.f32 %v172, %v175
    %v177 = vrot.slane %v176, 2
    %v178 = vadd.f32 %v176, %v177
    %v179 = vrot.slane %v178, 1
    %v180 = vadd.f32 %v178, %v179
    %v181 = vmul.f32 %v180, 0.125
    %v182 = vmul.f32 %v172, %v172
    %v183 = vrot.slane %v182, 4
    %v184 = vadd.f32 %v182, %v183
    %v185 = vrot.slane %v184, 2
    %v186 = vadd.f32 %v184, %v185
    %v187 = vrot.slane %v186, 1
    %v188 = vadd.f32 %v186, %v187
    %v189 = vmul.f32 %v188, 0.125
    %v190 = vmul.f32 %v181, %v181
    %v191 = vsub.f32 %v189, %v190
    %v192 = vadd.f32 %v191, 1e-05
    %v193 = vrsqrt.pop %v192
    %v194 = vmul.f32 %v103, %v193
    %v195 = vmul.f32 %v181, %v194
    %v196 = vsub.f32 %v104, %v195
    %v198 = vlaneseq
    %v199 = vshrl.u32 %v198, 7
    %v200 = vsub.s32 0, %v199
    %v201 = vrot.slane %v194, %v200
    %v203 = vmul.f32 %v172, %v201
    %v205 = vlaneseq
    %v206 = vshrl.u32 %v205, 7
    %v207 = vsub.s32 0, %v206
    %v208 = vrot.slane %v196, %v207
    %v210 = vadd.f32 %v203, %v208
    %v211 = vmax.f32 %v210, 0.0
    %v212 = vld [vmem:[#allocation7] sm:$0xff]
    %v213 = vld [vmem:[#allocation7 + $0x8] sm:$0xff]
    %v214 = vld [vmem:[#allocation7 + $0x10] sm:$0xff]
    %v215 = vld [vmem:[#allocation7 + $0x18] sm:$0xff]
    %v216 = vld [vmem:[#allocation7 + $0x20] sm:$0xff]
    %v217 = vld [vmem:[#allocation7 + $0x28] sm:$0xff]
    %v218 = vld [vmem:[#allocation7 + $0x30] sm:$0xff]
    %v219 = vld [vmem:[#allocation7 + $0x38] sm:$0xff]
    %v220 = vld [vmem:[#allocation7 + $0x40] sm:$0xff]
    %v221 = vld [vmem:[#allocation7 + $0x48] sm:$0xff]
    %v222 = vld [vmem:[#allocation7 + $0x50] sm:$0xff]
    %v223 = vld [vmem:[#allocation7 + $0x58] sm:$0xff]
    %v224 = vld [vmem:[#allocation7 + $0x60] sm:$0xff]
    %v225 = vld [vmem:[#allocation7 + $0x68] sm:$0xff]
    %v226 = vld [vmem:[#allocation7 + $0x70] sm:$0xff]
    %v227 = vld [vmem:[#allocation7 + $0x78] sm:$0xff]
    %v228 = vld [vmem:[%s5] sm:$0x1]
    %v229 = vld [vmem:[%s6] sm:$0x1]
    %230 = vmatprep.subr.mxu0 0.0
    %231 = vmatpush1.msra.mxu0 %v212
    %232 = vmatprep.subr.mxu0 0.0
    %233 = vmatpush1.msra.mxu0 %v213
    %234 = vmatprep.subr.mxu0 0.0
    %235 = vmatpush1.msra.mxu0 %v214
    %236 = vmatprep.subr.mxu0 0.0
    %237 = vmatpush1.msra.mxu0 %v215
    %238 = vmatprep.subr.mxu0 0.0
    %239 = vmatpush1.msra.mxu0 %v216
    %240 = vmatprep.subr.mxu0 0.0
    %241 = vmatpush1.msra.mxu0 %v217
    %242 = vmatprep.subr.mxu0 0.0
    %243 = vmatpush1.msra.mxu0 %v218
    %244 = vmatprep.subr.mxu0 0.0
    %245 = vmatpush1.msra.mxu0 %v219
    %246 = vmatprep.subr.mxu0 0.0
    %247 = vmatpush1.msra.mxu0 %v220
    %248 = vmatprep.subr.mxu0 0.0
    %249 = vmatpush1.msra.mxu0 %v221
    %250 = vmatprep.subr.mxu0 0.0
    %251 = vmatpush1.msra.mxu0 %v222
    %252 = vmatprep.subr.mxu0 0.0
    %253 = vmatpush1.msra.mxu0 %v223
    %254 = vmatprep.subr.mxu0 0.0
    %255 = vmatpush1.msra.mxu0 %v224
    %256 = vmatprep.subr.mxu0 0.0
    %257 = vmatpush1.msra.mxu0 %v225
    %258 = vmatprep.subr.mxu0 0.0
    %259 = vmatpush1.msra.mxu0 %v226
    %260 = vmatprep.subr.mxu0 0.0
    %261 = vmatpush1.msra.mxu0 %v227
    %262 = vmatprep.subr.mxu0 0.0
    %263 = vmatpush1.msra.mxu0 0.0
    %264 = vmatprep.subr.mxu0 0.0
    %265 = vmatpush1.msra.mxu0 0.0
    %266 = vmatprep.subr.mxu0 0.0
    %267 = vmatpush1.msra.mxu0 0.0
    %268 = vmatprep.subr.mxu0 0.0
    %269 = vmatpush1.msra.mxu0 0.0
    %270 = vmatprep.subr.mxu0 0.0
    %271 = vmatpush1.msra.mxu0 0.0
    %272 = vmatprep.subr.mxu0 0.0
    %273 = vmatpush1.msra.mxu0 0.0
    %274 = vmatprep.subr.mxu0 0.0
    %275 = vmatpush1.msra.mxu0 0.0
    %276 = vmatprep.subr.mxu0 0.0
    %277 = vmatpush1.msra.mxu0 0.0
    %278 = vmatprep.subr.mxu0 0.0
    %279 = vmatpush1.msra.mxu0 0.0
    %280 = vmatprep.subr.mxu0 0.0
    %281 = vmatpush1.msra.mxu0 0.0
    %282 = vmatprep.subr.mxu0 0.0
    %283 = vmatpush1.msra.mxu0 0.0
    %284 = vmatprep.subr.mxu0 0.0
    %285 = vmatpush1.msra.mxu0 0.0
    %286 = vmatprep.subr.mxu0 0.0
    %287 = vmatpush1.msra.mxu0 0.0
    %288 = vmatprep.subr.mxu0 0.0
    %289 = vmatpush1.msra.mxu0 0.0
    %290 = vmatprep.subr.mxu0 0.0
    %291 = vmatpush1.msra.mxu0 0.0
    %292 = vmatprep.subr.mxu0 0.0
    %293 = vmatpush1.msra.mxu0 0.0
    %294 = vmatprep.mubr.f32.mxu0 0.0
    %295 = vmatmul.mubr.f32.gmra.mrb[0].mxu0 %v211
    %v296 = vpop.f32.mrb[0].mxu0
    %v297 = vadd.f32 0.0, %v296
    %v298 = vpop.f32.mrb[0].mxu0
    %299 = vdwg.mxu0
    %v300 = vrot.slane %v297, 4
    %v301 = vadd.f32 %v297, %v300
    %v302 = vrot.slane %v301, 2
    %v303 = vadd.f32 %v301, %v302
    %v304 = vrot.slane %v303, 1
    %v305 = vadd.f32 %v303, %v304
    %v306 = vmul.f32 %v305, 0.125
    %v307 = vmul.f32 %v297, %v297
    %v308 = vrot.slane %v307, 4
    %v309 = vadd.f32 %v307, %v308
    %v310 = vrot.slane %v309, 2
    %v311 = vadd.f32 %v309, %v310
    %v312 = vrot.slane %v311, 1
    %v313 = vadd.f32 %v311, %v312
    %v314 = vmul.f32 %v313, 0.125
    %v315 = vmul.f32 %v306, %v306
    %v316 = vsub.f32 %v314, %v315
    %v317 = vadd.f32 %v316, 1e-05
    %v318 = vrsqrt.pop %v317
    %v319 = vmul.f32 %v228, %v318
    %v320 = vmul.f32 %v306, %v319
    %v321 = vsub.f32 %v229, %v320
    %v323 = vlaneseq
    %v324 = vshrl.u32 %v323, 7
    %v325 = vsub.s32 0, %v324
    %v326 = vrot.slane %v319, %v325
    %v328 = vmul.f32 %v297, %v326
    %v330 = vlaneseq
    %v331 = vshrl.u32 %v330, 7
    %v332 = vsub.s32 0, %v331
    %v333 = vrot.slane %v321, %v332
    %v335 = vadd.f32 %v328, %v333
    %v336 = vmax.f32 %v335, 0.0
    %v337 = vld [vmem:[#allocation8] sm:$0xff]
    %v338 = vld [vmem:[#allocation8 + $0x8] sm:$0xff]
    %v339 = vld [vmem:[#allocation8 + $0x10] sm:$0xff]
    %v340 = vld [vmem:[#allocation8 + $0x18] sm:$0xff]
    %v341 = vld [vmem:[#allocation8 + $0x20] sm:$0xff]
    %v342 = vld [vmem:[#allocation8 + $0x28] sm:$0xff]
    %v343 = vld [vmem:[#allocation8 + $0x30] sm:$0xff]
    %v344 = vld [vmem:[#allocation8 + $0x38] sm:$0xff]
    %v345 = vld [vmem:[#allocation8 + $0x40] sm:$0xff]
    %v346 = vld [vmem:[#allocation8 + $0x48] sm:$0xff]
    %v347 = vld [vmem:[#allocation8 + $0x50] sm:$0xff]
    %v348 = vld [vmem:[#allocation8 + $0x58] sm:$0xff]
    %v349 = vld [vmem:[#allocation8 + $0x60] sm:$0xff]
    %v350 = vld [vmem:[#allocation8 + $0x68] sm:$0xff]
    %v351 = vld [vmem:[#allocation8 + $0x70] sm:$0xff]
    %v352 = vld [vmem:[#allocation8 + $0x78] sm:$0xff]
    %v353 = vld [vmem:[%s8] sm:$0x1]
    %v355 = vlaneseq
    %v356 = vshrl.u32 %v355, 7
    %v357 = vsub.s32 0, %v356
    %v358 = vrot.slane %v353, %v357
    %360 = vmatprep.subr.mxu0 0.0
    %361 = vmatpush1.msra.mxu0 %v337
    %362 = vmatprep.subr.mxu0 0.0
    %363 = vmatpush1.msra.mxu0 %v338
    %364 = vmatprep.subr.mxu0 0.0
    %365 = vmatpush1.msra.mxu0 %v339
    %366 = vmatprep.subr.mxu0 0.0
    %367 = vmatpush1.msra.mxu0 %v340
    %368 = vmatprep.subr.mxu0 0.0
    %369 = vmatpush1.msra.mxu0 %v341
    %370 = vmatprep.subr.mxu0 0.0
    %371 = vmatpush1.msra.mxu0 %v342
    %372 = vmatprep.subr.mxu0 0.0
    %373 = vmatpush1.msra.mxu0 %v343
    %374 = vmatprep.subr.mxu0 0.0
    %375 = vmatpush1.msra.mxu0 %v344
    %376 = vmatprep.subr.mxu0 0.0
    %377 = vmatpush1.msra.mxu0 %v345
    %378 = vmatprep.subr.mxu0 0.0
    %379 = vmatpush1.msra.mxu0 %v346
    %380 = vmatprep.subr.mxu0 0.0
    %381 = vmatpush1.msra.mxu0 %v347
    %382 = vmatprep.subr.mxu0 0.0
    %383 = vmatpush1.msra.mxu0 %v348
    %384 = vmatprep.subr.mxu0 0.0
    %385 = vmatpush1.msra.mxu0 %v349
    %386 = vmatprep.subr.mxu0 0.0
    %387 = vmatpush1.msra.mxu0 %v350
    %388 = vmatprep.subr.mxu0 0.0
    %389 = vmatpush1.msra.mxu0 %v351
    %390 = vmatprep.subr.mxu0 0.0
    %391 = vmatpush1.msra.mxu0 %v352
    %392 = vmatprep.subr.mxu0 0.0
    %393 = vmatpush1.msra.mxu0 0.0
    %394 = vmatprep.subr.mxu0 0.0
    %395 = vmatpush1.msra.mxu0 0.0
    %396 = vmatprep.subr.mxu0 0.0
    %397 = vmatpush1.msra.mxu0 0.0
    %398 = vmatprep.subr.mxu0 0.0
    %399 = vmatpush1.msra.mxu0 0.0
    %400 = vmatprep.subr.mxu0 0.0
    %401 = vmatpush1.msra.mxu0 0.0
    %402 = vmatprep.subr.mxu0 0.0
    %403 = vmatpush1.msra.mxu0 0.0
    %404 = vmatprep.subr.mxu0 0.0
    %405 = vmatpush1.msra.mxu0 0.0
    %406 = vmatprep.subr.mxu0 0.0
    %407 = vmatpush1.msra.mxu0 0.0
    %408 = vmatprep.subr.mxu0 0.0
    %409 = vmatpush1.msra.mxu0 0.0
    %410 = vmatprep.subr.mxu0 0.0
    %411 = vmatpush1.msra.mxu0 0.0
    %412 = vmatprep.subr.mxu0 0.0
    %413 = vmatpush1.msra.mxu0 0.0
    %414 = vmatprep.subr.mxu0 0.0
    %415 = vmatpush1.msra.mxu0 0.0
    %416 = vmatprep.subr.mxu0 0.0
    %417 = vmatpush1.msra.mxu0 0.0
    %418 = vmatprep.subr.mxu0 0.0
    %419 = vmatpush1.msra.mxu0 0.0
    %420 = vmatprep.subr.mxu0 0.0
    %421 = vmatpush1.msra.mxu0 0.0
    %422 = vmatprep.subr.mxu0 0.0
    %423 = vmatpush1.msra.mxu0 0.0
    %424 = vmatprep.mubr.f32.mxu0 0.0
    %425 = vmatmul.mubr.f32.gmra.mrb[0].mxu0 %v336
    %v426 = vpop.f32.mrb[0].mxu0
    %v427 = vadd.f32 %v358, %v426
    %v428 = vpop.f32.mrb[0].mxu0
    %429 = vdwg.mxu0
    %430 = vst [vmem:[#allocation10] sm:$0xff] %v427
    // Predicated region
    $region54: #{tpu_custom_call.1} parent=1 // pred_check
      _
    $region55: #{tpu_custom_call.1} parent=1 // pred_check_branch
      %432 = sbr.rel (0) target = $region57
    $region56: #{tpu_custom_call.1} parent=1 // pred_region
      %s434 = ssub.s32 128, 128
      %435 = vsyncadd [#allocation4], %s434
      %s437 = sshll.u32 [#allocation10], 4
      %s438 = int_to_ptr.vmem [resolvable:$true] %s437
      %440 = dma.vmem_to_hbm [thread:$0]  %s438, 128, %s9, [#allocation4]
    $region57: #{tpu_custom_call.1} parent=1 // pred_fallthru
      _
    // Predicated region
    $region58: #{tpu_custom_call.1} parent=1 // pred_check
      _
    $region59: #{tpu_custom_call.1} parent=1 // pred_check_branch
      %442 = sbr.rel (0) target = $region61
    $region60: #{tpu_custom_call.1} parent=1 // pred_region
      %443 = dma.done [#allocation4], 128
    $region61: #{tpu_custom_call.1} parent=1 // pred_fallthru
      _
    %444 = vsyncpa [#allocation3], 1
    %445 = vsyncpa [#allocation6], 1
    %446 = vsyncpa [#allocation9], 1
    %447 = vsyncpa [#allocation4], 1

</llo_original>
